<compile_context>
chip_gen: v6e
topology: v6e:2x2x1
jax: 0.10.0
libtpu: 0.0.40
codegen_flags: <defaults>
</compile_context>

<pallas_src>
import numpy as np
import jax
import jax.numpy as jnp
from jax.experimental import pallas as pl
from jax.experimental.pallas import tpu as pltpu


# ----------------------------- Pallas kernel -------------------------------

def _patch_matmul_kernel(x_ref, w_ref, o_ref):
    # x_ref: (1, t, D)  bf16   -- t spatial positions of one image
    # w_ref: (K, D)     bf16   -- transformed filter, VMEM-resident (constant index map)
    # o_ref: (1, K, t)  f32    -- lane-dense output block (t is a multiple of 128)
    x = x_ref[0]                                             # (t, D)
    acc = jax.lax.dot_general(
        w_ref[...], x,
        dimension_numbers=(((1,), (1,)), ((), ())),          # contract on D
        preferred_element_type=jnp.float32)                  # (K, t), f32 accumulation
    o_ref[0] = acc.astype(o_ref.dtype)


def _pick_hw_tile(hw, max_tile=1024):
    """Largest multiple of 128 that divides hw, capped at max_tile (None if unaligned)."""
    if hw % 128 != 0:
        return None
    t = 128
    for cand in (256, 512, 1024):
        if cand <= max_tile and hw % cand == 0:
            t = cand
    return t


def patch_matmul(x_nhw_d, w_kd, *, max_tile=1024, compute_dtype=jnp.bfloat16):
    """x_nhw_d: (N, HW, D), w_kd: (K, D)  ->  (N, K, HW) float32 (permuted layout)."""
    N, HW, D = x_nhw_d.shape
    K, Dw = w_kd.shape
    assert D == Dw

    t = _pick_hw_tile(HW, max_tile)
    if t is None:
        # pad the spatial axis to a 128 multiple so output stores stay lane-dense
        hw_p = ((HW + 127) // 128) * 128
        x_nhw_d = jnp.pad(x_nhw_d, ((0, 0), (0, hw_p - HW), (0, 0)))
        t = _pick_hw_tile(hw_p, max_tile)
    else:
        hw_p = HW

    x = x_nhw_d.astype(compute_dtype)
    w = w_kd.astype(compute_dtype)

    itemsize = jnp.dtype(compute_dtype).itemsize
    flops = 2 * N * hw_p * D * K
    bytes_accessed = (N * hw_p * D * itemsize          # patches read
                      + K * D * itemsize               # filter read (resident)
                      + N * K * hw_p * 4)              # f32 output write

    out = pl.pallas_call(
        _patch_matmul_kernel,
        out_shape=jax.ShapeDtypeStruct((N, K, hw_p), jnp.float32),
        grid_spec=pltpu.PrefetchScalarGridSpec(
            num_scalar_prefetch=0,
            grid=(N, hw_p // t),
            in_specs=[
                pl.BlockSpec((1, t, D), lambda n, j: (n, j, 0)),
                pl.BlockSpec((K, D), lambda n, j: (0, 0)),
            ],
            out_specs=pl.BlockSpec((1, K, t), lambda n, j: (n, 0, j)),
        ),
        compiler_params=pltpu.CompilerParams(
            dimension_semantics=("parallel", "parallel")),
        cost_estimate=pl.CostEstimate(
            flops=flops, transcendentals=0, bytes_accessed=bytes_accessed),
    )(x, w)

    if hw_p != HW:
        out = out[:, :, :HW]
    return out


# ------------------------------ JAX glue ------------------------------------

def trans_filter_jax(w, inds):
    """w: (Co, Ci, Si, k, k), inds: (So, Si, k, k, 3) -> (Co, So, Ci, Si, k, k)."""
    So, Si, kk = inds.shape[0], inds.shape[1], inds.shape[2]
    Co, Ci = w.shape[0], w.shape[1]
    inds_r = np.asarray(inds).reshape(-1, 3).astype(np.int32)   # host-side index table
    w_indexed = w[:, :, inds_r[:, 0], inds_r[:, 1], inds_r[:, 2]]   # (Co, Ci, So*Si*k*k)
    w_indexed = w_indexed.reshape(Co, Ci, So, Si, kk, kk)
    return jnp.transpose(w_indexed, (0, 2, 1, 3, 4, 5))             # (Co, So, Ci, Si, k, k)


def patch_conv_layer_forward(patches, weight, inds,
                             out_channels, in_channels,
                             input_stabilizer_size, output_stabilizer_size, ksize,
                             compute_dtype=jnp.bfloat16):
    """Replicates PatchConvLayer.forward (patches: (N, H, W, Ci*Si, k, k))."""
    Co, So = out_channels, output_stabilizer_size
    Ci, Si = in_channels, input_stabilizer_size
    K = Co * So
    C = Ci * Si
    D = C * ksize * ksize

    tw = trans_filter_jax(weight, inds)                 # (Co, So, Ci, Si, k, k)
    w_kd = tw.reshape(K, D)                             # 'kcqr' flattened -> (K, D)

    N, H, W = patches.shape[0], patches.shape[1], patches.shape[2]
    x = patches.reshape(N, H * W, D)                    # 'nhwcqr' flattened

    # Hot path: einsum('nhwcqr,kcqr->nhwk') computed per image as (K,D)@(D,HW tile),
    # producing the output already in the permuted (N, K, H*W) layout (lane-dense).
    out_nk_hw = patch_matmul(x, w_kd, compute_dtype=compute_dtype)   # (N, K, H*W) f32

    # torch:  out (N,H,W,K);  n, w_, h_, k = out.shape          (so w_ = H, h_ = W)
    #         out.transpose(1,3).transpose(2,3)  -> logical (N, K, H, W)
    #         .view(n, Co, So, h_, w_)           -> shape   (N, Co, So, W, H)
    # Row-major reshape of (N, K, H*W) reproduces that view exactly (also when H != W).
    return out_nk_hw.reshape(N, Co, So, W, H)


# --------------------------- deterministic setup -----------------------------

def make_c4_inds(So, Si, k):
    """Deterministic group-style index table: inds[so, si, u, v] = (s', u', v')."""
    inds = np.zeros((So, Si, k, k, 3), dtype=np.int32)
    uu, vv = np.meshgrid(np.arange(k), np.arange(k), indexing="ij")
    for so in range(So):
        ru, rv = uu, vv
        for _ in range(so % 4):
            ru, rv = rv, (k - 1 - ru)                   # 90-degree rotation
        for si in range(Si):
            inds[so, si, :, :, 0] = (si + so) % Si
            inds[so, si, :, :, 1] = ru
            inds[so, si, :, :, 2] = rv
    return inds


if __name__ == "__main__":
    Ci, Si = 4, 4          # in_channels, input_stabilizer_size
    Co, So = 8, 4          # out_channels, output_stabilizer_size
    ksize = 3
    C, K = Ci * Si, Co * So
    inds = make_c4_inds(So, Si, ksize)

    key = jax.random.PRNGKey(0)
    # square and rectangular spatial grids (rectangular exercises the torch view quirk)
    for (N, Hs, Ws) in [(2, 16, 16), (2, 16, 8)]:
        key, k_p, k_w = jax.random.split(key, 3)
        patches = jax.random.normal(k_p, (N, Hs, Ws, C, ksize, ksize), dtype=jnp.float32)
        weight = jax.random.normal(k_w, (Co, Ci, Si, ksize, ksize), dtype=jnp.float32) * 0.1

        out = patch_conv_layer_forward(
            patches, weight, inds,
            out_channels=Co, in_channels=Ci,
            input_stabilizer_size=Si, output_stabilizer_size=So, ksize=ksize,
        )
        out = jax.block_until_ready(out)
        assert out.shape == (N, Co, So, Ws, Hs)

        # Reference: same math as the torch module, with the same bf16-rounded inputs
        # (products are exact in f32, so only accumulation order differs from the kernel).
        tw_ref = trans_filter_jax(weight, inds).reshape(K, C, ksize, ksize)
        p_q = patches.astype(jnp.bfloat16).astype(jnp.float32)
        w_q = tw_ref.astype(jnp.bfloat16).astype(jnp.float32)
        ref = jnp.einsum("nhwcqr,kcqr->nhwk", p_q, w_q,
                         precision=jax.lax.Precision.HIGHEST)
        ref = jnp.transpose(ref, (0, 3, 1, 2)).reshape(N, Co, So, Ws, Hs)
        np.testing.assert_allclose(np.asarray(out), np.asarray(ref), rtol=1e-3, atol=1e-3)

    print("KERNEL_OK")
</pallas_src>

<mosaic_0001>
module attributes {stable_mosaic.version = 11 : i64} {
  func.func @_patch_matmul_kernel(%arg0: i32, %arg1: i32, %arg2: memref<1x256x144xbf16, #tpu.memory_space<vmem>>, %arg3: memref<32x144xbf16, #tpu.memory_space<vmem>>, %arg4: memref<1x32x256xf32, #tpu.memory_space<vmem>>) attributes {dimension_semantics = [#tpu.dimension_semantics<parallel>, #tpu.dimension_semantics<parallel>], iteration_bounds = array<i64: 2, 1>, scalar_prefetch = 0 : i64, scratch_operands = 0 : i64, tpu.core_type = #tpu.core_type<tc>, window_params = [{transform_indices = @transform_0, window_bounds = array<i64: 1, 256, 144>}, {pipeline_mode = #tpu.pipeline_mode<synchronous>, transform_indices = @transform_1, window_bounds = array<i64: 32, 144>}, {transform_indices = @transform_2, window_bounds = array<i64: 1, 32, 256>}]} {
    %c0 = arith.constant 0 : index
    %c0_0 = arith.constant 0 : index
    %c0_1 = arith.constant 0 : index
    %0 = vector.load %arg2[%c0, %c0_0, %c0_1] : memref<1x256x144xbf16, #tpu.memory_space<vmem>>, vector<1x256x144xbf16>
    %1 = vector.shape_cast %0 : vector<1x256x144xbf16> to vector<256x144xbf16>
    %c0_2 = arith.constant 0 : index
    %c0_3 = arith.constant 0 : index
    %2 = vector.load %arg3[%c0_2, %c0_3] : memref<32x144xbf16, #tpu.memory_space<vmem>>, vector<32x144xbf16>
    %cst = arith.constant dense<0.000000e+00> : vector<32x256xf32>
    %3 = tpu.matmul %2, %1, %cst {dimension_numbers = #tpu.dot_dimension_numbers<[1], [1], [0], [0], [0, 0, 1, 0], [], []>} : vector<32x144xbf16>, vector<256x144xbf16>, vector<32x256xf32> -> vector<32x256xf32>
    %c0_4 = arith.constant 0 : index
    %c0_5 = arith.constant 0 : index
    %c0_6 = arith.constant 0 : index
    %4 = vector.load %arg4[%c0_4, %c0_5, %c0_6] : memref<1x32x256xf32, #tpu.memory_space<vmem>>, vector<1x32x256xf32>
    %5 = vector.shape_cast %4 : vector<1x32x256xf32> to vector<32x256xf32>
    %6 = vector.shape_cast %3 : vector<32x256xf32> to vector<1x32x256xf32>
    tpu.vector_store %arg4[%c0_4, %c0_5, %c0_6], %6 {strides = array<i32>} : memref<1x32x256xf32, #tpu.memory_space<vmem>>, vector<1x32x256xf32>,
    return
  }
  func.func @transform_0(%arg0: i32, %arg1: i32) -> (i32, i32, i32) {
    %c0_i32 = arith.constant 0 : i32
    %c0_i32_0 = arith.constant 0 : i32
    return %arg0, %arg1, %c0_i32 : i32, i32, i32
  }
  func.func @transform_1(%arg0: i32, %arg1: i32) -> (i32, i32) {
    %c0_i32 = arith.constant 0 : i32
    %c0_i32_0 = arith.constant 0 : i32
    %c0_i32_1 = arith.constant 0 : i32
    return %c0_i32, %c0_i32_0 : i32, i32
  }
  func.func @transform_2(%arg0: i32, %arg1: i32) -> (i32, i32, i32) {
    %c0_i32 = arith.constant 0 : i32
    %c0_i32_0 = arith.constant 0 : i32
    return %arg0, %c0_i32, %arg1 : i32, i32, i32
  }
}

</mosaic_0001>

<llo_original>
// kernel: tpu_custom_call.1
$region0: #{tpu_custom_call.1}
  #allocation0 [shape = 'u32[]', space=smem, size = 0x4, offset = 0x4, fixed_abs, tag = 'smem constant byte address 0x4 - core index']
  #allocation1 [shape = 'u32[144,128]{1,0:T(1,128)}', space=vmem, size = 0x12000, scoped, tag = 'internal scratch']
  %s0 = inlined_call_operand.vmem [shape: bf16[2,256,144], index: 0, kind: input, shape index: {}]
  %s1 = inlined_call_operand.vmem [shape: bf16[32,144], index: 1, kind: input, shape index: {}]
  %s2 = inlined_call_operand.hbm [shape: f32[2,32,256], index: 2, kind: output, shape index: {}]
  %s3 = sld [smem:[#allocation0]]
  $region41: #{tpu_custom_call.1} parent=0
    _
  %s5 = ssub.s32 1, %s3
  %s6 = scalar_select 0, %s5, %s3
  $region1: #{tpu_custom_call.1} parent=0
    #allocation2 [shape = 'u8[65536]{0}', space=vmem, size = 0x10000, scoped, tag = 'output window, operand 0']
    #allocation3 [shape = 's32[2]{0}', space=sflag, size = 0x8, scoped, tag = 'scoped memory for tpu_custom_call.1']
    %7 = vsyncpa [#allocation3], 0
    %s8 = scalar_lea.sflag [#allocation3], 1
    %9 = vsyncpa %s8, 0
    loop: start=0, step=1, limit=4
    $region2: #{tpu_custom_call.1} parent=1 // loop_pre_header
      _
    $region3: #{tpu_custom_call.1} parent=1 // loop_header
      %s11 = sphi 0, %s15
      %p12 = scmp.ge.s32.totalorder %s11, 4
      %s18 = sphi 0, %s30
      %s19 = sphi 0, %s26
      %s20 = sphi 0, %s18
      %s21 = sphi 0, %s19
      %s22 = sphi 0, %s20
      %s23 = sphi 0, %s21
      %s35 = sphi 0, %s37
      %s38 = sphi 0, %s35
      %s39 = sphi 0, %s38
      %s55 = sphi 0, %s39
      %s59 = sphi 0, %s59
      %s61 = sphi 0, %s59
      %s62 = sphi 0, %s61
      %s76 = sphi 0, %s62
      %s84 = sphi 0, %s86
      %s87 = sphi 0, %s84
      %s88 = sphi 0, %s87
      %s104 = sphi 0, %s88
    $region4: #{tpu_custom_call.1} parent=1 // loop_header_branch
      %14 = sbr.rel (%p12) target = $region8
    $region5: #{tpu_custom_call.1} parent=1 // loop_body
      %s16 = ssub.s32 %s11, 1
      %s17 = ssub.s32 %s11, 2
      %s24 = sadd.s32 1, %s19
      %p25 = scmp.ge.s32.totalorder %s24, 1
      %s26 = scalar_select %p25, 0, %s24
      %s27 = sadd.s32 1, %s18
      %s28 = scalar_select %p25, %s27, %s18
      %p29 = scmp.ge.s32.totalorder %s28, 2
      %s30 = scalar_select %p29, 0, %s28
      %s31 = ssub.s32 %s18, %s30
      %s32 = ssub.s32 %s19, %s26
      %s33 = sor.u32 %s31, %s32
      %p34 = scmp.eq.s32.totalorder %s33, 0
      %s36 = sadd.s32 %s35, 1
      %s37 = scalar_select %p34, %s35, %s36
      %p40 = pneg %p34
      %p41 = scmp.eq.s32.totalorder %s11, 1
      %p42 = por %p40, %p41
      %p43 = scmp.ne.s32.totalorder %s35, %s38
      %p44 = scmp.eq.s32.totalorder %s11, 0
      %p45 = por %p43, %p44
      %p46 = scmp.ne.s32.totalorder %s35, %s38
      %p47 = scmp.eq.s32.totalorder %s16, 1
      %p48 = por %p46, %p47
      %p49 = scmp.ne.s32.totalorder %s38, %s39
      %p50 = scmp.eq.s32.totalorder %s16, 0
      %p51 = por %p49, %p50
      %p52 = scmp.ne.s32.totalorder %s38, %s39
      %p53 = scmp.eq.s32.totalorder %s17, 1
      %p54 = por %p52, %p53
      %p56 = scmp.ne.s32.totalorder %s39, %s55
      %p57 = scmp.eq.s32.totalorder %s17, 0
      %p58 = por %p56, %p57
      %s60 = sadd.s32 %s59, 1
      %p63 = scmp.eq.s32.totalorder %s11, 1
      %p64 = scmp.ne.s32.totalorder %s59, %s61
      %p65 = scmp.eq.s32.totalorder %s11, 0
      %p66 = por %p64, %p65
      %p67 = scmp.ne.s32.totalorder %s59, %s61
      %p68 = scmp.eq.s32.totalorder %s16, 1
      %p69 = por %p67, %p68
      %p70 = scmp.ne.s32.totalorder %s61, %s62
      %p71 = scmp.eq.s32.totalorder %s16, 0
      %p72 = por %p70, %p71
      %p73 = scmp.ne.s32.totalorder %s61, %s62
      %p74 = scmp.eq.s32.totalorder %s17, 1
      %p75 = por %p73, %p74
      %p77 = scmp.ne.s32.totalorder %s62, %s76
      %p78 = scmp.eq.s32.totalorder %s17, 0
      %p79 = por %p77, %p78
      %s80 = ssub.s32 %s18, %s30
      %s81 = ssub.s32 %s19, %s26
      %s82 = sor.u32 %s80, %s81
      %p83 = scmp.eq.s32.totalorder %s82, 0
      %s85 = sadd.s32 %s84, 1
      %s86 = scalar_select %p83, %s84, %s85
      %p89 = pneg %p83
      %p90 = scmp.eq.s32.totalorder %s11, 1
      %p91 = por %p89, %p90
      %p92 = scmp.ne.s32.totalorder %s84, %s87
      %p93 = scmp.eq.s32.totalorder %s11, 0
      %p94 = por %p92, %p93
      %p95 = scmp.ne.s32.totalorder %s84, %s87
      %p96 = scmp.eq.s32.totalorder %s16, 1
      %p97 = por %p95, %p96
      %p98 = scmp.ne.s32.totalorder %s87, %s88
      %p99 = scmp.eq.s32.totalorder %s16, 0
      %p100 = por %p98, %p99
      %p101 = scmp.ne.s32.totalorder %s87, %s88
      %p102 = scmp.eq.s32.totalorder %s17, 1
      %p103 = por %p101, %p102
      %p105 = scmp.ne.s32.totalorder %s88, %s104
      %p106 = scmp.eq.s32.totalorder %s17, 0
      %p107 = por %p105, %p106
      %p108 = scmp.le.s32.totalorder 1, %s11
      %p109 = scmp.lt.s32.totalorder %s11, 3
      %p110 = pnand %p108, %p109
      %p111 = pneg %p110
      // Predicated region
      $region9: #{tpu_custom_call.1} parent=5 // pred_check
        _
      $region10: #{tpu_custom_call.1} parent=5 // pred_check_branch
        %113 = sbr.rel (%p110) target = $region12
      $region11: #{tpu_custom_call.1} parent=5 // pred_region
        %s114 = ssub.s32 %s11, 1
        // Predicated region
        $region13: #{tpu_custom_call.1} parent=11 // pred_check
          %p115 = pneg %p72
        $region14: #{tpu_custom_call.1} parent=11 // pred_check_branch
          %117 = sbr.rel (%p115) target = $region16
        $region15: #{tpu_custom_call.1} parent=11 // pred_region
          _
        $region16: #{tpu_custom_call.1} parent=11 // pred_fallthru
          _
      $region12: #{tpu_custom_call.1} parent=5 // pred_fallthru
        _
      %p118 = scmp.lt.s32.totalorder %s11, 2
      // Predicated region
      $region17: #{tpu_custom_call.1} parent=5 // pred_check
        %p119 = pneg %p118
      $region18: #{tpu_custom_call.1} parent=5 // pred_check_branch
        %121 = sbr.rel (%p119) target = $region20
      $region19: #{tpu_custom_call.1} parent=5 // pred_region
        // Predicated region
        $region21: #{tpu_custom_call.1} parent=19 // pred_check
          %p122 = pneg %p45
        $region22: #{tpu_custom_call.1} parent=19 // pred_check_branch
          %124 = sbr.rel (%p122) target = $region24
        $region23: #{tpu_custom_call.1} parent=19 // pred_region
          %s125 = smul.u32 32, %s19
          %p126 = scmp.lt.s32.totalorder %s18, 1
          %s127 = scalar_select %p126, %s18, 1
          %p128 = scmp.lt.s32.totalorder %s125, 31
          %s129 = scalar_select %p128, %s125, 31
          %s130 = smul.addr %s129, 2
          %s131 = smul.addr %s127, 64
          %s132 = sadd.s32 %s130, %s131
          %s133 = smul.addr %s132, 4
          %s134 = scalar_lea.vmem %s0, %s133
          %s135 = smul.u32 32, %s19
        $region24: #{tpu_custom_call.1} parent=19 // pred_fallthru
          _
      $region20: #{tpu_custom_call.1} parent=5 // pred_fallthru
        _
      %p136 = scmp.le.s32.totalorder 1, %s11
      %p137 = scmp.lt.s32.totalorder %s11, 3
      %p138 = pnand %p136, %p137
      %p139 = pneg %p138
      // Predicated region
      $region25: #{tpu_custom_call.1} parent=5 // pred_check
        _
      $region26: #{tpu_custom_call.1} parent=5 // pred_check_branch
        %141 = sbr.rel (%p138) target = $region28
      $region27: #{tpu_custom_call.1} parent=5 // pred_region
        %s142 = ssub.s32 %s11, 1
        %s143 = smul.u32 32, %s21
        %p144 = scmp.lt.s32.totalorder %s20, 1
        %s145 = scalar_select %p144, %s20, 1
        %p146 = scmp.lt.s32.totalorder %s143, 31
        %s147 = scalar_select %p146, %s143, 31
        %s148 = smul.addr %s147, 2
        %s149 = smul.addr %s145, 64
        %s150 = sadd.s32 %s148, %s149
        %s151 = smul.addr %s150, 4
        %s152 = scalar_lea.vmem %s0, %s151
        %p153 = pneg %p51
        %p154 = pneg %p48
        %p155 = pneg %p72
        %p156 = pneg %p69
        %p157 = pneg %p100
        %p158 = pneg %p97
        %s159 = sand.u32 %s87, 1
        %s160 = scalar_lea.sflag [#allocation3], %s159
        %s161 = sand.u32 %s87, 1
        %s162 = smul.addr %s161, 64
        %s163 = scalar_lea.vmem [#allocation2], %s162
        %s164 = smul.u32 32, %s21
        %p165 = scmp.lt.s32.totalorder %s20, 1
        %s166 = scalar_select %p165, %s20, 1
        %p167 = scmp.lt.s32.totalorder %s164, 31
        %s168 = scalar_select %p167, %s164, 31
        %s169 = smul.addr %s168, 2
        %s170 = smul.addr %s166, 64
        %s171 = sadd.s32 %s169, %s170
        %s172 = smul.addr %s171, 4
        %s173 = scalar_lea.vmem %s0, %s172
        %s174 = smul.u32 32, %s21
        %s175 = smul.u32 2, %s21
        %v176 = vld [vmem:[%s173] sm:$0xff]
        %v177 = vld [vmem:[%s173 + $0x8] sm:$0xff]
        %v178 = vld [vmem:[%s173 + $0x10] sm:$0xff]
        %v179 = vld [vmem:[%s173 + $0x18] sm:$0xff]
        %v180 = vld [vmem:[%s173 + $0x20] sm:$0xff]
        %v181 = vld [vmem:[%s173 + $0x28] sm:$0xff]
        %v182 = vld [vmem:[%s173 + $0x30] sm:$0xff]
        %v183 = vld [vmem:[%s173 + $0x38] sm:$0xff]
        %v184 = vld [vmem:[%s173 + $0x40] sm:$0xff]
        %v185 = vld [vmem:[%s173 + $0x48] sm:$0xff]
        %v186 = vld [vmem:[%s173 + $0x50] sm:$0xff]
        %v187 = vld [vmem:[%s173 + $0x58] sm:$0xff]
        %v188 = vld [vmem:[%s173 + $0x60] sm:$0xff]
        %v189 = vld [vmem:[%s173 + $0x68] sm:$0xff]
        %v190 = vld [vmem:[%s173 + $0x70] sm:$0xff]
        %v191 = vld [vmem:[%s173 + $0x78] sm:$0xff]
        %v192 = vld [vmem:[%s173 + $0x80] sm:$0xff]
        %v193 = vld [vmem:[%s173 + $0x88] sm:$0xff]
        %v194 = vld [vmem:[%s173 + $0x90] sm:$0xff]
        %v195 = vld [vmem:[%s173 + $0x98] sm:$0xff]
        %v196 = vld [vmem:[%s173 + $0xa0] sm:$0xff]
        %v197 = vld [vmem:[%s173 + $0xa8] sm:$0xff]
        %v198 = vld [vmem:[%s173 + $0xb0] sm:$0xff]
        %v199 = vld [vmem:[%s173 + $0xb8] sm:$0xff]
        %v200 = vld [vmem:[%s173 + $0xc0] sm:$0xff]
        %v201 = vld [vmem:[%s173 + $0xc8] sm:$0xff]
        %v202 = vld [vmem:[%s173 + $0xd0] sm:$0xff]
        %v203 = vld [vmem:[%s173 + $0xd8] sm:$0xff]
        %v204 = vld [vmem:[%s173 + $0xe0] sm:$0xff]
        %v205 = vld [vmem:[%s173 + $0xe8] sm:$0xff]
        %v206 = vld [vmem:[%s173 + $0xf0] sm:$0xff]
        %v207 = vld [vmem:[%s173 + $0xf8] sm:$0xff]
        %v208 = vld [vmem:[%s1] sm:$0xff]
        %v209 = vld [vmem:[%s1 + $0x8] sm:$0xff]
        %v210 = vld [vmem:[%s1 + $0x10] sm:$0xff]
        %v211 = vld [vmem:[%s1 + $0x18] sm:$0xff]
        %v216 = vunpack.c.l.b16 %v208
        %v217 = vunpack.c.h.b16 %v208
        %v218 = vunpack.c.l.b16 %v209
        %v219 = vunpack.c.h.b16 %v209
        %v220 = vunpack.c.l.b16 %v210
        %v221 = vunpack.c.h.b16 %v210
        %v222 = vunpack.c.l.b16 %v211
        %v223 = vunpack.c.h.b16 %v211
        %v224 = vpack.c.b16 %v218, %v216
        %v225 = vpack.c.b16 %v219, %v217
        %v226 = vpack.c.b16 %v222, %v220
        %v227 = vpack.c.b16 %v223, %v221
        %v262 = vunpack.c.l.b16 %v176
        %v263 = vunpack.c.h.b16 %v176
        %v264 = vunpack.c.l.b16 %v177
        %v265 = vunpack.c.h.b16 %v177
        %v266 = vunpack.c.l.b16 %v178
        %v267 = vunpack.c.h.b16 %v178
        %v268 = vunpack.c.l.b16 %v179
        %v269 = vunpack.c.h.b16 %v179
        %v270 = vunpack.c.l.b16 %v180
        %v271 = vunpack.c.h.b16 %v180
        %v272 = vunpack.c.l.b16 %v181
        %v273 = vunpack.c.h.b16 %v181
        %v274 = vunpack.c.l.b16 %v182
        %v275 = vunpack.c.h.b16 %v182
        %v276 = vunpack.c.l.b16 %v183
        %v277 = vunpack.c.h.b16 %v183
        %v278 = vunpack.c.l.b16 %v184
        %v279 = vunpack.c.h.b16 %v184
        %v280 = vunpack.c.l.b16 %v185
        %v281 = vunpack.c.h.b16 %v185
        %v282 = vunpack.c.l.b16 %v186
        %v283 = vunpack.c.h.b16 %v186
        %v284 = vunpack.c.l.b16 %v187
        %v285 = vunpack.c.h.b16 %v187
        %v286 = vunpack.c.l.b16 %v188
        %v287 = vunpack.c.h.b16 %v188
        %v288 = vunpack.c.l.b16 %v189
        %v289 = vunpack.c.h.b16 %v189
        %v290 = vunpack.c.l.b16 %v190
        %v291 = vunpack.c.h.b16 %v190
        %v292 = vunpack.c.l.b16 %v191
        %v293 = vunpack.c.h.b16 %v191
        %v294 = vunpack.c.l.b16 %v192
        %v295 = vunpack.c.h.b16 %v192
        %v296 = vunpack.c.l.b16 %v193
        %v297 = vunpack.c.h.b16 %v193
        %v298 = vunpack.c.l.b16 %v194
        %v299 = vunpack.c.h.b16 %v194
        %v300 = vunpack.c.l.b16 %v195
        %v301 = vunpack.c.h.b16 %v195
        %v302 = vunpack.c.l.b16 %v196
        %v303 = vunpack.c.h.b16 %v196
        %v304 = vunpack.c.l.b16 %v197
        %v305 = vunpack.c.h.b16 %v197
        %v306 = vunpack.c.l.b16 %v198
        %v307 = vunpack.c.h.b16 %v198
        %v308 = vunpack.c.l.b16 %v199
        %v309 = vunpack.c.h.b16 %v199
        %v310 = vunpack.c.l.b16 %v200
        %v311 = vunpack.c.h.b16 %v200
        %v312 = vunpack.c.l.b16 %v201
        %v313 = vunpack.c.h.b16 %v201
        %v314 = vunpack.c.l.b16 %v202
        %v315 = vunpack.c.h.b16 %v202
        %v316 = vunpack.c.l.b16 %v203
        %v317 = vunpack.c.h.b16 %v203
        %v318 = vunpack.c.l.b16 %v204
        %v319 = vunpack.c.h.b16 %v204
        %v320 = vunpack.c.l.b16 %v205
        %v321 = vunpack.c.h.b16 %v205
        %v322 = vunpack.c.l.b16 %v206
        %v323 = vunpack.c.h.b16 %v206
        %v324 = vunpack.c.l.b16 %v207
        %v325 = vunpack.c.h.b16 %v207
        %v326 = vpack.c.b16 %v264, %v262
        %v327 = vpack.c.b16 %v265, %v263
        %v328 = vpack.c.b16 %v268, %v266
        %v329 = vpack.c.b16 %v269, %v267
        %v330 = vpack.c.b16 %v272, %v270
        %v331 = vpack.c.b16 %v273, %v271
        %v332 = vpack.c.b16 %v276, %v274
        %v333 = vpack.c.b16 %v277, %v275
        %v334 = vpack.c.b16 %v280, %v278
        %v335 = vpack.c.b16 %v281, %v279
        %v336 = vpack.c.b16 %v284, %v282
        %v337 = vpack.c.b16 %v285, %v283
        %v338 = vpack.c.b16 %v288, %v286
        %v339 = vpack.c.b16 %v289, %v287
        %v340 = vpack.c.b16 %v292, %v290
        %v341 = vpack.c.b16 %v293, %v291
        %v342 = vpack.c.b16 %v296, %v294
        %v343 = vpack.c.b16 %v297, %v295
        %v344 = vpack.c.b16 %v300, %v298
        %v345 = vpack.c.b16 %v301, %v299
        %v346 = vpack.c.b16 %v304, %v302
        %v347 = vpack.c.b16 %v305, %v303
        %v348 = vpack.c.b16 %v308, %v306
        %v349 = vpack.c.b16 %v309, %v307
        %v350 = vpack.c.b16 %v312, %v310
        %v351 = vpack.c.b16 %v313, %v311
        %v352 = vpack.c.b16 %v316, %v314
        %v353 = vpack.c.b16 %v317, %v315
        %v354 = vpack.c.b16 %v320, %v318
        %v355 = vpack.c.b16 %v321, %v319
        %v356 = vpack.c.b16 %v324, %v322
        %v357 = vpack.c.b16 %v325, %v323
        %vm374 = vcmask 130048
        %v376 = vsel %vm374, %v225, 0
        %v379 = vsel %vm374, %v227, 0
        %v382 = vsel %vm374, %v327, 0
        %v385 = vsel %vm374, %v329, 0
        %v388 = vsel %vm374, %v331, 0
        %v391 = vsel %vm374, %v333, 0
        %v394 = vsel %vm374, %v335, 0
        %v397 = vsel %vm374, %v337, 0
        %v400 = vsel %vm374, %v339, 0
        %v403 = vsel %vm374, %v341, 0
        %v406 = vsel %vm374, %v343, 0
        %v409 = vsel %vm374, %v345, 0
        %v412 = vsel %vm374, %v347, 0
        %v415 = vsel %vm374, %v349, 0
        %v418 = vsel %vm374, %v351, 0
        %v421 = vsel %vm374, %v353, 0
        %v424 = vsel %vm374, %v355, 0
        %v427 = vsel %vm374, %v357, 0
        %429 = vmatprep.subr.bf16.mxu0 %v403
        %430 = vmatpush1.bf16.xpose.msra.mxu0 %v340
        %431 = vmatprep.subr.bf16.mxu0 %v400
        %432 = vmatpush1.bf16.xpose.msra.mxu0 %v338
        %433 = vmatprep.subr.bf16.mxu0 %v397
        %434 = vmatpush1.bf16.xpose.msra.mxu0 %v336
        %435 = vmatprep.subr.bf16.mxu0 %v394
        %436 = vmatpush1.bf16.xpose.msra.mxu0 %v334
        %437 = vmatprep.subr.bf16.mxu0 %v391
        %438 = vmatpush1.bf16.xpose.msra.mxu0 %v332
        %439 = vmatprep.subr.bf16.mxu0 %v388
        %440 = vmatpush1.bf16.xpose.msra.mxu0 %v330
        %441 = vmatprep.subr.bf16.mxu0 %v385
        %442 = vmatpush1.bf16.xpose.msra.mxu0 %v328
        %443 = vmatprep.subr.bf16.mxu0 %v382
        %444 = vmatpush1.bf16.xpose.msra.mxu0 %v326
        %445 = vmatprep.subr.bf16.mxu0 %v427
        %446 = vmatpush2.bf16.xpose.msra.mxu0 %v356
        %447 = vmatprep.subr.bf16.mxu0 %v424
        %448 = vmatpush2.bf16.xpose.msra.mxu0 %v354
        %449 = vmatprep.subr.bf16.mxu0 %v421
        %450 = vmatpush2.bf16.xpose.msra.mxu0 %v352
        %451 = vmatprep.subr.bf16.mxu0 %v418
        %452 = vmatpush2.bf16.xpose.msra.mxu0 %v350
        %453 = vmatprep.subr.bf16.mxu0 %v415
        %454 = vmatpush2.bf16.xpose.msra.mxu0 %v348
        %455 = vmatprep.subr.bf16.mxu0 %v412
        %456 = vmatpush2.bf16.xpose.msra.mxu0 %v346
        %457 = vmatprep.subr.bf16.mxu0 %v409
        %458 = vmatpush2.bf16.xpose.msra.mxu0 %v344
        %459 = vmatprep.subr.bf16.mxu0 %v406
        %460 = vmatpush2.bf16.xpose.msra.mxu0 %v342
        %461 = vmatprep.mubr.bf16.mxu0 %v376
        %462 = vmatmul.mubr.bf16.gmra.mxu0 %v224
        %v463 = vpop.f32.mrf.mxu0
        %v464 = vadd.f32 0.0, %v463
        %v465 = vpop.f32.mrf.mxu0
        %v466 = vadd.f32 0.0, %v465
        %v467 = vpop.f32.mrf.mxu0
        %v468 = vadd.f32 0.0, %v467
        %v469 = vpop.f32.mrf.mxu0
        %v470 = vadd.f32 0.0, %v469
        %471 = vmatprep.mubr.bf16.mxu0 %v379
        %472 = vmatmul.mubr.bf16.gmra.mxu0 %v226
        %v473 = vpop.f32.mrf.mxu0
        %v474 = vadd.f32 0.0, %v473
        %v475 = vpop.f32.mrf.mxu0
        %v476 = vadd.f32 0.0, %v475
        %v477 = vpop.f32.mrf.mxu0
        %v478 = vadd.f32 0.0, %v477
        %v479 = vpop.f32.mrf.mxu0
        %v480 = vadd.f32 0.0, %v479
        %481 = vdwg.mxu0
        %482 = vst [vmem:[%s163] sm:$0xff] %v464
        %483 = vst [vmem:[%s163 + $0x8] sm:$0xff] %v466
        %484 = vst [vmem:[%s163 + $0x10] sm:$0xff] %v468
        %485 = vst [vmem:[%s163 + $0x18] sm:$0xff] %v470
        %486 = vst [vmem:[%s163 + $0x20] sm:$0xff] %v474
        %487 = vst [vmem:[%s163 + $0x28] sm:$0xff] %v476
        %488 = vst [vmem:[%s163 + $0x30] sm:$0xff] %v478
        %489 = vst [vmem:[%s163 + $0x38] sm:$0xff] %v480
        %s490 = sand.u32 %s87, 1
        %s491 = scalar_lea.sflag [#allocation3], %s490
        %s492 = sand.u32 %s87, 1
        %s493 = smul.addr %s492, 64
        %s494 = scalar_lea.vmem [#allocation2], %s493
        // Predicated region
        $region29: #{tpu_custom_call.1} parent=27 // pred_check
          %p495 = pneg %p97
        $region30: #{tpu_custom_call.1} parent=27 // pred_check_branch
          %497 = sbr.rel (%p495) target = $region32
        $region31: #{tpu_custom_call.1} parent=27 // pred_region
          %s498 = smul.u32 2, %s21
          %s500 = ssub.s32 1024, 1024
          %501 = vsyncadd %s491, %s500
          %s502 = smul.addr %s20, 8
          %s503 = sadd.s32 %s498, %s502
          %s504 = smul.addr %s503, 128
          %s505 = scalar_lea.hbm %s2, %s504
          %s506 = sshll.u32 %s494, 4
          %s507 = int_to_ptr.vmem [resolvable:$true] %s506
          %512 = dma.vmem_to_hbm [thread:$0]  %s507, 1024, %s505, %s491, 256, 256, 16
        $region32: #{tpu_custom_call.1} parent=27 // pred_fallthru
          _
      $region28: #{tpu_custom_call.1} parent=5 // pred_fallthru
        _
      %p513 = scmp.le.s32.totalorder 2, %s11
      // Predicated region
      $region33: #{tpu_custom_call.1} parent=5 // pred_check
        %p514 = pneg %p513
      $region34: #{tpu_custom_call.1} parent=5 // pred_check_branch
        %516 = sbr.rel (%p514) target = $region36
      $region35: #{tpu_custom_call.1} parent=5 // pred_region
        %s517 = ssub.s32 %s11, 2
        // Predicated region
        $region37: #{tpu_custom_call.1} parent=35 // pred_check
          %p518 = pneg %p103
        $region38: #{tpu_custom_call.1} parent=35 // pred_check_branch
          %520 = sbr.rel (%p518) target = $region40
        $region39: #{tpu_custom_call.1} parent=35 // pred_region
          %s521 = sand.u32 %s88, 1
          %s522 = scalar_lea.sflag [#allocation3], %s521
          %s523 = sand.u32 %s88, 1
          %s524 = smul.addr %s523, 64
          %s525 = scalar_lea.vmem [#allocation2], %s524
          %526 = dma.done %s522, 1024
        $region40: #{tpu_custom_call.1} parent=35 // pred_fallthru
          _
      $region36: #{tpu_custom_call.1} parent=5 // pred_fallthru
        _
    $region6: #{tpu_custom_call.1} parent=1 // loop_footer
      %s15 = sadd.s32 1, %s11
    $region7: #{tpu_custom_call.1} parent=1 // loop_footer_branch
      %10 = sbr.rel target = $region3
    $region8: #{tpu_custom_call.1} parent=1 // loop_exit
      _
    %527 = vsyncpa [#allocation3], 1
    %s528 = scalar_lea.sflag [#allocation3], 1
    %529 = vsyncpa %s528, 1

</llo_original>
